<compile_context>
chip_gen: v7x
topology: tpu7x:2x2x1
jax: 0.10.0
libtpu: 0.0.40
codegen_flags: <defaults>
</compile_context>

<pallas_src>
import jax
import jax.numpy as jnp
from jax import lax
from jax.experimental import pallas as pl
from jax.experimental.pallas import tpu as pltpu


# ---------------------------------------------------------------------------
# Pallas kernel: one (TM, TN) tile of  sigmoid(z_b @ z_b^T)  for one graph b.
# ---------------------------------------------------------------------------
def _link_prob_kernel(zr_ref, zc_ref, out_ref):
    # zr_ref : (1, TM, Fp) f32 row block of z_b
    # zc_ref : (1, Np, Fp) f32 resident z_b   OR   (1, TN, Fp) column block
    # out_ref: (1, TM, TN) f32 tile of link probabilities
    tn = out_ref.shape[2]
    zr = zr_ref[0].astype(jnp.bfloat16)                       # (TM, Fp)
    if zc_ref.shape[1] == tn:
        # Column block already matches the output tile (non-resident path, or
        # resident path with a single j-tile).
        zc = zc_ref[0]
    else:
        # Resident z_b: slice the TN rows for this j-tile inside the kernel.
        start = pl.multiple_of(pl.program_id(2) * tn, tn)
        zc = zc_ref[0, pl.ds(start, tn), :]
    zc = zc.astype(jnp.bfloat16)                              # (TN, Fp)
    # Contract on the shared last (lane) axis -> MXU directly, no vxpose.
    s = lax.dot_general(
        zr, zc,
        dimension_numbers=(((1,), (1,)), ((), ())),
        preferred_element_type=jnp.float32)                   # (TM, TN) f32
    # sigmoid(s) == 0.5 * (tanh(0.5 * s) + 1): one EUP op per element.
    out_ref[0] = (0.5 * (jnp.tanh(0.5 * s) + 1.0)).astype(out_ref.dtype)


_VMEM_BUDGET = 24 * 1024 * 1024   # headroom under v7x's 32 MiB scoped default


def link_probabilities(z):
    """z: [B, N, F] float32 -> sigmoid(z @ z^T): [B, N, N] float32."""
    B, N, F = z.shape

    # Tiny graphs: the pad-to-128 Pallas path would be >100x redundant output
    # work; a plain einsum is faster and exactly matches module numerics.
    if N < 64:
        return jax.nn.sigmoid(jnp.einsum("bnf,bmf->bnm", z, z))

    # Pad N only to a multiple of 128 (not to the tile size).
    n_pad = pl.cdiv(N, 128) * 128
    f_pad = pl.cdiv(F, 128) * 128

    def footprint(tile, resident):
        # Double-buffered f32 input blocks + f32 output tile.
        zr_b = 2 * tile * f_pad * 4
        zc_b = 2 * (n_pad if resident else tile) * f_pad * 4
        out_b = 2 * tile * tile * 4
        return zr_b + zc_b + out_b

    # Largest tile in {512, 256, 128} that divides n_pad and fits the budget
    # with a per-graph resident RHS; fall back to per-block columns if the
    # resident z_b is too large.
    tile, resident = 128, False
    for t in (512, 256, 128):
        if n_pad % t == 0 and footprint(t, True) <= _VMEM_BUDGET:
            tile, resident = t, True
            break
    else:
        for t in (512, 256, 128):
            if n_pad % t == 0 and footprint(t, False) <= _VMEM_BUDGET:
                tile = t
                break
        # TODO(synk): for very large padded F (>~2048) add a K grid axis with
        # an f32 accumulator scratch ("arbitrary" semantics) instead of
        # keeping F untiled.

    # Single pad of the f32 input (only if needed); bf16 cast is in-kernel.
    zp = z
    if (n_pad, f_pad) != (N, F):
        zp = jnp.pad(z, ((0, 0), (0, n_pad - N), (0, f_pad - F)))

    if resident:
        zc_spec = pl.BlockSpec((1, n_pad, f_pad), lambda b, i, j: (b, 0, 0))
    else:
        zc_spec = pl.BlockSpec((1, tile, f_pad), lambda b, i, j: (b, j, 0))

    grid = (B, n_pad // tile, n_pad // tile)
    out = pl.pallas_call(
        _link_prob_kernel,
        out_shape=jax.ShapeDtypeStruct((B, n_pad, n_pad), jnp.float32),
        grid_spec=pltpu.PrefetchScalarGridSpec(
            num_scalar_prefetch=0,
            grid=grid,
            in_specs=[
                pl.BlockSpec((1, tile, f_pad), lambda b, i, j: (b, i, 0)),
                zc_spec,
            ],
            out_specs=pl.BlockSpec((1, tile, tile), lambda b, i, j: (b, i, j)),
        ),
        compiler_params=pltpu.CompilerParams(
            dimension_semantics=("parallel", "parallel", "parallel"),
            vmem_limit_bytes=32 * 1024 * 1024),
    )(zp, zp)

    # Padded entries would be sigmoid(0)=0.5; slice only if we actually padded.
    if n_pad != N:
        out = out[:, :N, :N]
    return out


# ---------------------------------------------------------------------------
# Plain-JAX glue: to_dense_batch / to_dense_adj (PyG semantics; assumes the
# `batch` vector is sorted ascending, as PyG guarantees).
# ---------------------------------------------------------------------------
def to_dense_batch(x, batch, batch_size, max_nodes):
    num_nodes = x.shape[0]
    counts = jnp.bincount(batch, length=batch_size)
    starts = jnp.concatenate([jnp.zeros((1,), jnp.int32),
                              jnp.cumsum(counts)[:-1].astype(jnp.int32)])
    pos = jnp.arange(num_nodes, dtype=jnp.int32) - starts[batch]
    z = jnp.zeros((batch_size, max_nodes, x.shape[1]), x.dtype)
    z = z.at[batch, pos].set(x)
    mask = jnp.zeros((batch_size, max_nodes), bool).at[batch, pos].set(True)
    return z, mask, pos


def to_dense_adj(edge_index, batch, pos, batch_size, max_nodes):
    src, dst = edge_index[0], edge_index[1]
    b = batch[src]
    adj = jnp.zeros((batch_size, max_nodes, max_nodes), jnp.float32)
    adj = adj.at[b, pos[src], pos[dst]].add(1.0)
    return adj


# ---------------------------------------------------------------------------
# Forward pass matching SimpleLinkPredictor.forward(data)
# ---------------------------------------------------------------------------
def simple_link_predictor_forward(x, edge_index, batch, batch_size, max_nodes):
    z, _, pos = to_dense_batch(x, batch, batch_size, max_nodes)
    adj = to_dense_adj(edge_index, batch, pos, batch_size, max_nodes)
    link_probs = link_probabilities(z)            # Pallas hot path
    return None, x, link_probs, adj


if __name__ == "__main__":
    key = jax.random.PRNGKey(0)

    def make_graph_batch(k, B, npg, F):
        num_nodes = B * npg
        x = jax.random.normal(k, (num_nodes, F), dtype=jnp.float32)
        batch = jnp.repeat(jnp.arange(B, dtype=jnp.int32), npg)
        idx = jnp.arange(num_nodes, dtype=jnp.int32)
        src = idx
        dst = (((idx % npg) + 1) % npg + batch * npg).astype(jnp.int32)
        edge_index = jnp.stack([src, dst], axis=0)     # [2, E]
        return x, edge_index, batch

    def check_case(k, B, npg, F):
        x, edge_index, batch = make_graph_batch(k, B, npg, F)
        _, x_out, link_probs, adj = simple_link_predictor_forward(
            x, edge_index, batch, B, npg)
        jax.block_until_ready(link_probs)
        jax.block_until_ready(adj)

        z_ref, _, _ = to_dense_batch(x, batch, B, npg)
        # Full-f32 reference (module semantics); loose tolerance covers the
        # bf16-operand MXU path.
        ref_f32 = jax.nn.sigmoid(jnp.einsum("bnf,bmf->bnm", z_ref, z_ref))
        assert link_probs.shape == (B, npg, npg), link_probs.shape
        assert adj.shape == (B, npg, npg), adj.shape
        assert jnp.allclose(link_probs, ref_f32, atol=3e-2), (B, npg, F)
        if npg >= 64:
            # Pallas path: tight check against a bf16-operand / f32-accum ref.
            zb = z_ref.astype(jnp.bfloat16)
            ref_bf16 = jax.nn.sigmoid(
                jnp.einsum("bnf,bmf->bnm", zb, zb,
                           preferred_element_type=jnp.float32))
            assert jnp.allclose(link_probs, ref_bf16, atol=2e-3), (B, npg, F)

    k1, k2, k3 = jax.random.split(key, 3)
    # Pallas path, N already 128-aligned (no pad, no post-kernel slice).
    check_case(k1, B=2, npg=128, F=32)
    # Pallas path with padding (96 -> 128) and a post-kernel slice.
    check_case(k2, B=2, npg=96, F=32)
    # Tiny-graph fallback path (plain einsum).
    check_case(k3, B=2, npg=8, F=32)

    print("KERNEL_OK")
</pallas_src>

<mosaic_0001>
module attributes {stable_mosaic.version = 11 : i64} {
  func.func @_link_prob_kernel(%arg0: i32, %arg1: i32, %arg2: i32, %arg3: memref<1x128x128xf32, #tpu.memory_space<vmem>>, %arg4: memref<1x128x128xf32, #tpu.memory_space<vmem>>, %arg5: memref<1x128x128xf32, #tpu.memory_space<vmem>>) attributes {dimension_semantics = [#tpu.dimension_semantics<parallel>, #tpu.dimension_semantics<parallel>, #tpu.dimension_semantics<parallel>], iteration_bounds = array<i64: 2, 1, 1>, scalar_prefetch = 0 : i64, scratch_operands = 0 : i64, tpu.core_type = #tpu.core_type<tc>, window_params = [{transform_indices = @transform_0, window_bounds = array<i64: 1, 128, 128>}, {transform_indices = @transform_1, window_bounds = array<i64: 1, 128, 128>}, {transform_indices = @transform_2, window_bounds = array<i64: 1, 128, 128>}]} {
    %c0 = arith.constant 0 : index
    %c0_0 = arith.constant 0 : index
    %c0_1 = arith.constant 0 : index
    %0 = vector.load %arg3[%c0, %c0_0, %c0_1] : memref<1x128x128xf32, #tpu.memory_space<vmem>>, vector<1x128x128xf32>
    %1 = vector.shape_cast %0 : vector<1x128x128xf32> to vector<128x128xf32>
    %2 = arith.truncf %1 : vector<128x128xf32> to vector<128x128xbf16>
    %c0_2 = arith.constant 0 : index
    %c0_3 = arith.constant 0 : index
    %c0_4 = arith.constant 0 : index
    %3 = vector.load %arg4[%c0_2, %c0_3, %c0_4] : memref<1x128x128xf32, #tpu.memory_space<vmem>>, vector<1x128x128xf32>
    %4 = vector.shape_cast %3 : vector<1x128x128xf32> to vector<128x128xf32>
    %5 = arith.truncf %4 : vector<128x128xf32> to vector<128x128xbf16>
    %cst = arith.constant dense<0.000000e+00> : vector<128x128xf32>
    %6 = tpu.matmul %2, %5, %cst {dimension_numbers = #tpu.dot_dimension_numbers<[1], [1], [0], [0], [0, 0, 1, 0], [], []>} : vector<128x128xbf16>, vector<128x128xbf16>, vector<128x128xf32> -> vector<128x128xf32>
    %cst_5 = arith.constant 5.000000e-01 : f32
    %7 = vector.broadcast %cst_5 : f32 to vector<128x128xf32>
    %8 = arith.mulf %7, %6 : vector<128x128xf32>
    %9 = math.tanh %8 : vector<128x128xf32>
    %cst_6 = arith.constant 1.000000e+00 : f32
    %10 = vector.broadcast %cst_6 : f32 to vector<128x128xf32>
    %11 = arith.addf %9, %10 : vector<128x128xf32>
    %cst_7 = arith.constant 5.000000e-01 : f32
    %12 = vector.broadcast %cst_7 : f32 to vector<128x128xf32>
    %13 = arith.mulf %12, %11 : vector<128x128xf32>
    %c0_8 = arith.constant 0 : index
    %c0_9 = arith.constant 0 : index
    %c0_10 = arith.constant 0 : index
    %14 = vector.load %arg5[%c0_8, %c0_9, %c0_10] : memref<1x128x128xf32, #tpu.memory_space<vmem>>, vector<1x128x128xf32>
    %15 = vector.shape_cast %14 : vector<1x128x128xf32> to vector<128x128xf32>
    %16 = vector.shape_cast %13 : vector<128x128xf32> to vector<1x128x128xf32>
    tpu.vector_store %arg5[%c0_8, %c0_9, %c0_10], %16 {strides = array<i32>} : memref<1x128x128xf32, #tpu.memory_space<vmem>>, vector<1x128x128xf32>,
    return
  }
  func.func @transform_0(%arg0: i32, %arg1: i32, %arg2: i32) -> (i32, i32, i32) {
    %c0_i32 = arith.constant 0 : i32
    %c0_i32_0 = arith.constant 0 : i32
    return %arg0, %arg1, %c0_i32 : i32, i32, i32
  }
  func.func @transform_1(%arg0: i32, %arg1: i32, %arg2: i32) -> (i32, i32, i32) {
    %c0_i32 = arith.constant 0 : i32
    %c0_i32_0 = arith.constant 0 : i32
    %c0_i32_1 = arith.constant 0 : i32
    return %arg0, %c0_i32, %c0_i32_0 : i32, i32, i32
  }
  func.func @transform_2(%arg0: i32, %arg1: i32, %arg2: i32) -> (i32, i32, i32) {
    %c0_i32 = arith.constant 0 : i32
    return %arg0, %arg1, %arg2 : i32, i32, i32
  }
}

</mosaic_0001>

<llo_original>
// kernel: tpu_custom_call.1
$region0: #{tpu_custom_call.1}
  #allocation0 [shape = 'u32[]', space=smem, size = 0x4, offset = 0x4, fixed_abs, tag = 'smem constant byte address 0x4 - core index']
  #allocation1 [shape = 'u32[144,128]{1,0:T(1,128)}', space=vmem, size = 0x12000, scoped, tag = 'internal scratch']
  %s0 = inlined_call_operand.hbm [shape: f32[2,128,128], index: 0, kind: input, shape index: {}]
  %s1 = inlined_call_operand.hbm [shape: f32[2,128,128], index: 1, kind: input, shape index: {}]
  %s2 = inlined_call_operand.hbm [shape: f32[2,128,128], index: 2, kind: output, shape index: {}]
  %s3 = sld [smem:[#allocation0]]
  $region49: #{tpu_custom_call.1} parent=0
    _
  %s5 = ssub.s32 1, %s3
  %s6 = scalar_select 0, %s5, %s3
  $region1: #{tpu_custom_call.1} parent=0
    #allocation2 [shape = 'u8[131072]{0}', space=vmem, size = 0x20000, scoped, tag = 'input window, operand 0']
    #allocation3 [shape = 's32[2]{0}', space=sflag, size = 0x8, scoped, tag = 'scoped memory for tpu_custom_call.1']
    #allocation4 [shape = 's32[2]{0}', space=sflag, size = 0x8, scoped, tag = 'scoped memory for tpu_custom_call.1']
    #allocation5 [shape = 'u8[131072]{0}', space=vmem, size = 0x20000, scoped, tag = 'input window, operand 1']
    #allocation6 [shape = 's32[2]{0}', space=sflag, size = 0x8, scoped, tag = 'scoped memory for tpu_custom_call.1']
    #allocation7 [shape = 'u8[131072]{0}', space=vmem, size = 0x20000, scoped, tag = 'output window, operand 0']
    %7 = vsyncpa [#allocation3], 0
    %s8 = scalar_lea.sflag [#allocation3], 1
    %9 = vsyncpa %s8, 0
    %10 = vsyncpa [#allocation6], 0
    %s11 = scalar_lea.sflag [#allocation6], 1
    %12 = vsyncpa %s11, 0
    %13 = vsyncpa [#allocation4], 0
    %s14 = scalar_lea.sflag [#allocation4], 1
    %15 = vsyncpa %s14, 0
    loop: start=0, step=1, limit=4
    $region2: #{tpu_custom_call.1} parent=1 // loop_pre_header
      _
    $region3: #{tpu_custom_call.1} parent=1 // loop_header
      %s17 = sphi 0, %s21
      %p18 = scmp.ge.s32.totalorder %s17, 4
      %s24 = sphi 0, %s43
      %s25 = sphi 0, %s39
      %s26 = sphi 0, %s35
      %s27 = sphi 0, %s24
      %s28 = sphi 0, %s25
      %s29 = sphi 0, %s26
      %s30 = sphi 0, %s27
      %s31 = sphi 0, %s28
      %s32 = sphi 0, %s29
      %s48 = sphi 0, %s50
      %s51 = sphi 0, %s48
      %s52 = sphi 0, %s51
      %s68 = sphi 0, %s52
      %s74 = sphi 0, %s76
      %s77 = sphi 0, %s74
      %s78 = sphi 0, %s77
      %s94 = sphi 0, %s78
      %s104 = sphi 0, %s106
      %s107 = sphi 0, %s104
      %s108 = sphi 0, %s107
      %s124 = sphi 0, %s108
    $region4: #{tpu_custom_call.1} parent=1 // loop_header_branch
      %20 = sbr.rel (%p18) target = $region8
    $region5: #{tpu_custom_call.1} parent=1 // loop_body
      %s22 = ssub.s32 %s17, 1
      %s23 = ssub.s32 %s17, 2
      %s33 = sadd.s32 1, %s26
      %p34 = scmp.ge.s32.totalorder %s33, 1
      %s35 = scalar_select %p34, 0, %s33
      %s36 = sadd.s32 1, %s25
      %s37 = scalar_select %p34, %s36, %s25
      %p38 = scmp.ge.s32.totalorder %s37, 1
      %s39 = scalar_select %p38, 0, %s37
      %s40 = sadd.s32 1, %s24
      %s41 = scalar_select %p38, %s40, %s24
      %p42 = scmp.ge.s32.totalorder %s41, 2
      %s43 = scalar_select %p42, 0, %s41
      %s44 = ssub.s32 %s24, %s43
      %s45 = ssub.s32 %s25, %s39
      %s46 = sor.u32 %s44, %s45
      %p47 = scmp.eq.s32.totalorder %s46, 0
      %s49 = sadd.s32 %s48, 1
      %s50 = scalar_select %p47, %s48, %s49
      %p53 = pneg %p47
      %p54 = scmp.eq.s32.totalorder %s17, 1
      %p55 = por %p53, %p54
      %p56 = scmp.ne.s32.totalorder %s48, %s51
      %p57 = scmp.eq.s32.totalorder %s17, 0
      %p58 = por %p56, %p57
      %p59 = scmp.ne.s32.totalorder %s48, %s51
      %p60 = scmp.eq.s32.totalorder %s22, 1
      %p61 = por %p59, %p60
      %p62 = scmp.ne.s32.totalorder %s51, %s52
      %p63 = scmp.eq.s32.totalorder %s22, 0
      %p64 = por %p62, %p63
      %p65 = scmp.ne.s32.totalorder %s51, %s52
      %p66 = scmp.eq.s32.totalorder %s23, 1
      %p67 = por %p65, %p66
      %p69 = scmp.ne.s32.totalorder %s52, %s68
      %p70 = scmp.eq.s32.totalorder %s23, 0
      %p71 = por %p69, %p70
      %s72 = ssub.s32 %s24, %s43
      %p73 = scmp.eq.s32.totalorder %s72, 0
      %s75 = sadd.s32 %s74, 1
      %s76 = scalar_select %p73, %s74, %s75
      %p79 = pneg %p73
      %p80 = scmp.eq.s32.totalorder %s17, 1
      %p81 = por %p79, %p80
      %p82 = scmp.ne.s32.totalorder %s74, %s77
      %p83 = scmp.eq.s32.totalorder %s17, 0
      %p84 = por %p82, %p83
      %p85 = scmp.ne.s32.totalorder %s74, %s77
      %p86 = scmp.eq.s32.totalorder %s22, 1
      %p87 = por %p85, %p86
      %p88 = scmp.ne.s32.totalorder %s77, %s78
      %p89 = scmp.eq.s32.totalorder %s22, 0
      %p90 = por %p88, %p89
      %p91 = scmp.ne.s32.totalorder %s77, %s78
      %p92 = scmp.eq.s32.totalorder %s23, 1
      %p93 = por %p91, %p92
      %p95 = scmp.ne.s32.totalorder %s78, %s94
      %p96 = scmp.eq.s32.totalorder %s23, 0
      %p97 = por %p95, %p96
      %s98 = ssub.s32 %s24, %s43
      %s99 = ssub.s32 %s25, %s39
      %s100 = sor.u32 %s98, %s99
      %s101 = ssub.s32 %s26, %s35
      %s102 = sor.u32 %s100, %s101
      %p103 = scmp.eq.s32.totalorder %s102, 0
      %s105 = sadd.s32 %s104, 1
      %s106 = scalar_select %p103, %s104, %s105
      %p109 = pneg %p103
      %p110 = scmp.eq.s32.totalorder %s17, 1
      %p111 = por %p109, %p110
      %p112 = scmp.ne.s32.totalorder %s104, %s107
      %p113 = scmp.eq.s32.totalorder %s17, 0
      %p114 = por %p112, %p113
      %p115 = scmp.ne.s32.totalorder %s104, %s107
      %p116 = scmp.eq.s32.totalorder %s22, 1
      %p117 = por %p115, %p116
      %p118 = scmp.ne.s32.totalorder %s107, %s108
      %p119 = scmp.eq.s32.totalorder %s22, 0
      %p120 = por %p118, %p119
      %p121 = scmp.ne.s32.totalorder %s107, %s108
      %p122 = scmp.eq.s32.totalorder %s23, 1
      %p123 = por %p121, %p122
      %p125 = scmp.ne.s32.totalorder %s108, %s124
      %p126 = scmp.eq.s32.totalorder %s23, 0
      %p127 = por %p125, %p126
      %p128 = scmp.le.s32.totalorder 1, %s17
      %p129 = scmp.lt.s32.totalorder %s17, 3
      %p130 = pnand %p128, %p129
      %p131 = pneg %p130
      // Predicated region
      $region9: #{tpu_custom_call.1} parent=5 // pred_check
        _
      $region10: #{tpu_custom_call.1} parent=5 // pred_check_branch
        %133 = sbr.rel (%p130) target = $region12
      $region11: #{tpu_custom_call.1} parent=5 // pred_region
        %s134 = ssub.s32 %s17, 1
      $region12: #{tpu_custom_call.1} parent=5 // pred_fallthru
        _
      %p135 = scmp.lt.s32.totalorder %s17, 2
      // Predicated region
      $region13: #{tpu_custom_call.1} parent=5 // pred_check
        %p136 = pneg %p135
      $region14: #{tpu_custom_call.1} parent=5 // pred_check_branch
        %138 = sbr.rel (%p136) target = $region16
      $region15: #{tpu_custom_call.1} parent=5 // pred_region
        // Predicated region
        $region17: #{tpu_custom_call.1} parent=15 // pred_check
          %p139 = pneg %p58
        $region18: #{tpu_custom_call.1} parent=15 // pred_check_branch
          %141 = sbr.rel (%p139) target = $region20
        $region19: #{tpu_custom_call.1} parent=15 // pred_region
          %s142 = sand.u32 %s48, 1
          %s143 = scalar_lea.sflag [#allocation3], %s142
          %s144 = sand.u32 %s48, 1
          %s145 = smul.addr %s144, 128
          %s146 = scalar_lea.vmem [#allocation2], %s145
          %s147 = smul.u32 16, %s25
          %s149 = ssub.s32 2048, 2048
          %150 = vsyncadd %s143, %s149
          %s151 = smul.addr %s24, 16
          %s152 = sadd.s32 %s147, %s151
          %s153 = smul.addr %s152, 128
          %s154 = scalar_lea.hbm %s0, %s153
          %s155 = sshll.u32 %s146, 4
          %s156 = int_to_ptr.vmem [resolvable:$true] %s155
          %161 = dma.hbm_to_vmem [thread:$0]  %s154, 2048, %s156, %s143, 128, 128, 8
        $region20: #{tpu_custom_call.1} parent=15 // pred_fallthru
          _
        // Predicated region
        $region21: #{tpu_custom_call.1} parent=15 // pred_check
          %p162 = pneg %p84
        $region22: #{tpu_custom_call.1} parent=15 // pred_check_branch
          %164 = sbr.rel (%p162) target = $region24
        $region23: #{tpu_custom_call.1} parent=15 // pred_region
          %s165 = sand.u32 %s74, 1
          %s166 = scalar_lea.sflag [#allocation6], %s165
          %s167 = sand.u32 %s74, 1
          %s168 = smul.addr %s167, 128
          %s169 = scalar_lea.vmem [#allocation5], %s168
          %s171 = ssub.s32 2048, 2048
          %172 = vsyncadd %s166, %s171
          %s173 = smul.addr %s24, 16
          %s174 = smul.addr %s173, 128
          %s175 = scalar_lea.hbm %s1, %s174
          %s176 = sshll.u32 %s169, 4
          %s177 = int_to_ptr.vmem [resolvable:$true] %s176
          %182 = dma.hbm_to_vmem [thread:$0]  %s175, 2048, %s177, %s166, 128, 128, 8
        $region24: #{tpu_custom_call.1} parent=15 // pred_fallthru
          _
      $region16: #{tpu_custom_call.1} parent=5 // pred_fallthru
        _
      %p183 = scmp.le.s32.totalorder 1, %s17
      %p184 = scmp.lt.s32.totalorder %s17, 3
      %p185 = pnand %p183, %p184
      %p186 = pneg %p185
      // Predicated region
      $region25: #{tpu_custom_call.1} parent=5 // pred_check
        _
      $region26: #{tpu_custom_call.1} parent=5 // pred_check_branch
        %188 = sbr.rel (%p185) target = $region28
      $region27: #{tpu_custom_call.1} parent=5 // pred_region
        %s189 = ssub.s32 %s17, 1
        %s190 = sand.u32 %s51, 1
        %s191 = scalar_lea.sflag [#allocation3], %s190
        %s192 = sand.u32 %s51, 1
        %s193 = smul.addr %s192, 128
        %s194 = scalar_lea.vmem [#allocation2], %s193
        // Predicated region
        $region29: #{tpu_custom_call.1} parent=27 // pred_check
          %p195 = pneg %p64
        $region30: #{tpu_custom_call.1} parent=27 // pred_check_branch
          %197 = sbr.rel (%p195) target = $region32
        $region31: #{tpu_custom_call.1} parent=27 // pred_region
          %198 = dma.done %s191, 2048
        $region32: #{tpu_custom_call.1} parent=27 // pred_fallthru
          _
        %s199 = sand.u32 %s77, 1
        %s200 = scalar_lea.sflag [#allocation6], %s199
        %s201 = sand.u32 %s77, 1
        %s202 = smul.addr %s201, 128
        %s203 = scalar_lea.vmem [#allocation5], %s202
        // Predicated region
        $region33: #{tpu_custom_call.1} parent=27 // pred_check
          %p204 = pneg %p90
        $region34: #{tpu_custom_call.1} parent=27 // pred_check_branch
          %206 = sbr.rel (%p204) target = $region36
        $region35: #{tpu_custom_call.1} parent=27 // pred_region
          %207 = dma.done %s200, 2048
        $region36: #{tpu_custom_call.1} parent=27 // pred_fallthru
          _
        %s208 = sand.u32 %s51, 1
        %s209 = scalar_lea.sflag [#allocation3], %s208
        %s210 = sand.u32 %s51, 1
        %s211 = smul.addr %s210, 128
        %s212 = scalar_lea.vmem [#allocation2], %s211
        %p213 = pneg %p64
        %p214 = pneg %p61
        %s215 = sand.u32 %s77, 1
        %s216 = scalar_lea.sflag [#allocation6], %s215
        %s217 = sand.u32 %s77, 1
        %s218 = smul.addr %s217, 128
        %s219 = scalar_lea.vmem [#allocation5], %s218
        %p220 = pneg %p90
        %p221 = pneg %p87
        %p222 = pneg %p120
        %p223 = pneg %p117
        %s224 = sand.u32 %s107, 1
        %s225 = scalar_lea.sflag [#allocation4], %s224
        %s226 = sand.u32 %s107, 1
        %s227 = smul.addr %s226, 128
        %s228 = scalar_lea.vmem [#allocation7], %s227
        %s229 = smul.u32 16, %s28
        %s230 = smul.u32 16, %s28
        %v232 = vld [vmem:[%s194] sm:$0xff]
        %v233 = vld [vmem:[%s194 + $0x8] sm:$0xff]
        %v234 = vld [vmem:[%s194 + $0x10] sm:$0xff]
        %v235 = vld [vmem:[%s194 + $0x18] sm:$0xff]
        %v236 = vld [vmem:[%s194 + $0x20] sm:$0xff]
        %v237 = vld [vmem:[%s194 + $0x28] sm:$0xff]
        %v238 = vld [vmem:[%s194 + $0x30] sm:$0xff]
        %v239 = vld [vmem:[%s194 + $0x38] sm:$0xff]
        %v240 = vld [vmem:[%s194 + $0x40] sm:$0xff]
        %v241 = vld [vmem:[%s194 + $0x48] sm:$0xff]
        %v242 = vld [vmem:[%s194 + $0x50] sm:$0xff]
        %v243 = vld [vmem:[%s194 + $0x58] sm:$0xff]
        %v244 = vld [vmem:[%s194 + $0x60] sm:$0xff]
        %v245 = vld [vmem:[%s194 + $0x68] sm:$0xff]
        %v246 = vld [vmem:[%s194 + $0x70] sm:$0xff]
        %v247 = vld [vmem:[%s194 + $0x78] sm:$0xff]
        %v248 = vpack.c.bf16 %v233, %v232
        %v249 = vpack.c.bf16 %v235, %v234
        %v250 = vpack.c.bf16 %v237, %v236
        %v251 = vpack.c.bf16 %v239, %v238
        %v252 = vpack.c.bf16 %v241, %v240
        %v253 = vpack.c.bf16 %v243, %v242
        %v254 = vpack.c.bf16 %v245, %v244
        %v255 = vpack.c.bf16 %v247, %v246
        %v256 = vld [vmem:[%s203] sm:$0xff]
        %v257 = vld [vmem:[%s203 + $0x8] sm:$0xff]
        %v258 = vld [vmem:[%s203 + $0x10] sm:$0xff]
        %v259 = vld [vmem:[%s203 + $0x18] sm:$0xff]
        %v260 = vld [vmem:[%s203 + $0x20] sm:$0xff]
        %v261 = vld [vmem:[%s203 + $0x28] sm:$0xff]
        %v262 = vld [vmem:[%s203 + $0x30] sm:$0xff]
        %v263 = vld [vmem:[%s203 + $0x38] sm:$0xff]
        %v264 = vld [vmem:[%s203 + $0x40] sm:$0xff]
        %v265 = vld [vmem:[%s203 + $0x48] sm:$0xff]
        %v266 = vld [vmem:[%s203 + $0x50] sm:$0xff]
        %v267 = vld [vmem:[%s203 + $0x58] sm:$0xff]
        %v268 = vld [vmem:[%s203 + $0x60] sm:$0xff]
        %v269 = vld [vmem:[%s203 + $0x68] sm:$0xff]
        %v270 = vld [vmem:[%s203 + $0x70] sm:$0xff]
        %v271 = vld [vmem:[%s203 + $0x78] sm:$0xff]
        %v272 = vpack.c.bf16 %v257, %v256
        %v273 = vpack.c.bf16 %v259, %v258
        %v274 = vpack.c.bf16 %v261, %v260
        %v275 = vpack.c.bf16 %v263, %v262
        %v276 = vpack.c.bf16 %v265, %v264
        %v277 = vpack.c.bf16 %v267, %v266
        %v278 = vpack.c.bf16 %v269, %v268
        %v279 = vpack.c.bf16 %v271, %v270
        %280 = vmatprep.subr.bf16.mxu0 0
        %281 = vmatpush1.bf16.xpose.msra.mxu0 %v272
        %282 = vmatprep.subr.bf16.mxu0 0
        %283 = vmatpush1.bf16.xpose.msra.mxu0 %v273
        %284 = vmatprep.subr.bf16.mxu0 0
        %285 = vmatpush1.bf16.xpose.msra.mxu0 %v274
        %286 = vmatprep.subr.bf16.mxu0 0
        %287 = vmatpush1.bf16.xpose.msra.mxu0 %v275
        %288 = vmatprep.subr.bf16.mxu0 0
        %289 = vmatpush1.bf16.xpose.msra.mxu0 %v276
        %290 = vmatprep.subr.bf16.mxu0 0
        %291 = vmatpush1.bf16.xpose.msra.mxu0 %v277
        %292 = vmatprep.subr.bf16.mxu0 0
        %293 = vmatpush1.bf16.xpose.msra.mxu0 %v278
        %294 = vmatprep.subr.bf16.mxu0 0
        %295 = vmatpush1.bf16.xpose.msra.mxu0 %v279
        %296 = vmatprep.subr.bf16.mxu0 0
        %297 = vmatpush1.bf16.xpose.msra.mxu0 0
        %298 = vmatprep.subr.bf16.mxu0 0
        %299 = vmatpush1.bf16.xpose.msra.mxu0 0
        %300 = vmatprep.subr.bf16.mxu0 0
        %301 = vmatpush1.bf16.xpose.msra.mxu0 0
        %302 = vmatprep.subr.bf16.mxu0 0
        %303 = vmatpush1.bf16.xpose.msra.mxu0 0
        %304 = vmatprep.subr.bf16.mxu0 0
        %305 = vmatpush1.bf16.xpose.msra.mxu0 0
        %306 = vmatprep.subr.bf16.mxu0 0
        %307 = vmatpush1.bf16.xpose.msra.mxu0 0
        %308 = vmatprep.subr.bf16.mxu0 0
        %309 = vmatpush1.bf16.xpose.msra.mxu0 0
        %310 = vmatprep.subr.bf16.mxu0 0
        %311 = vmatpush1.bf16.xpose.msra.mxu0 0
        %312 = vmatprep.mubr.bf16.mxu0 0
        %313 = vmatmul.mubr.bf16.gmra.mrb[0].mxu0 %v248
        %v314 = vpop.f32.mrb[0].mxu0
        %v315 = vadd.f32 0.0, %v314
        %v316 = vpop.f32.mrb[0].mxu0
        %v317 = vpop.f32.mrb[0].mxu0
        %v318 = vadd.f32 0.0, %v317
        %v319 = vpop.f32.mrb[0].mxu0
        %320 = vmatprep.mubr.bf16.mxu0 0
        %321 = vmatmul.mubr.bf16.gmra.mrb[0].mxu0 %v249
        %v322 = vpop.f32.mrb[0].mxu0
        %v323 = vadd.f32 0.0, %v322
        %v324 = vpop.f32.mrb[0].mxu0
        %v325 = vpop.f32.mrb[0].mxu0
        %v326 = vadd.f32 0.0, %v325
        %v327 = vpop.f32.mrb[0].mxu0
        %328 = vmatprep.mubr.bf16.mxu0 0
        %329 = vmatmul.mubr.bf16.gmra.mrb[0].mxu0 %v250
        %v330 = vpop.f32.mrb[0].mxu0
        %v331 = vadd.f32 0.0, %v330
        %v332 = vpop.f32.mrb[0].mxu0
        %v333 = vpop.f32.mrb[0].mxu0
        %v334 = vadd.f32 0.0, %v333
        %v335 = vpop.f32.mrb[0].mxu0
        %336 = vmatprep.mubr.bf16.mxu0 0
        %337 = vmatmul.mubr.bf16.gmra.mrb[0].mxu0 %v251
        %v338 = vpop.f32.mrb[0].mxu0
        %v339 = vadd.f32 0.0, %v338
        %v340 = vpop.f32.mrb[0].mxu0
        %v341 = vpop.f32.mrb[0].mxu0
        %v342 = vadd.f32 0.0, %v341
        %v343 = vpop.f32.mrb[0].mxu0
        %344 = vmatprep.mubr.bf16.mxu0 0
        %345 = vmatmul.mubr.bf16.gmra.mrb[0].mxu0 %v252
        %v346 = vpop.f32.mrb[0].mxu0
        %v347 = vadd.f32 0.0, %v346
        %v348 = vpop.f32.mrb[0].mxu0
        %v349 = vpop.f32.mrb[0].mxu0
        %v350 = vadd.f32 0.0, %v349
        %v351 = vpop.f32.mrb[0].mxu0
        %352 = vmatprep.mubr.bf16.mxu0 0
        %353 = vmatmul.mubr.bf16.gmra.mrb[0].mxu0 %v253
        %v354 = vpop.f32.mrb[0].mxu0
        %v355 = vadd.f32 0.0, %v354
        %v356 = vpop.f32.mrb[0].mxu0
        %v357 = vpop.f32.mrb[0].mxu0
        %v358 = vadd.f32 0.0, %v357
        %v359 = vpop.f32.mrb[0].mxu0
        %360 = vmatprep.mubr.bf16.mxu0 0
        %361 = vmatmul.mubr.bf16.gmra.mrb[0].mxu0 %v254
        %v362 = vpop.f32.mrb[0].mxu0
        %v363 = vadd.f32 0.0, %v362
        %v364 = vpop.f32.mrb[0].mxu0
        %v365 = vpop.f32.mrb[0].mxu0
        %v366 = vadd.f32 0.0, %v365
        %v367 = vpop.f32.mrb[0].mxu0
        %368 = vmatprep.mubr.bf16.mxu0 0
        %369 = vmatmul.mubr.bf16.gmra.mrb[0].mxu0 %v255
        %v370 = vpop.f32.mrb[0].mxu0
        %v371 = vadd.f32 0.0, %v370
        %v372 = vpop.f32.mrb[0].mxu0
        %v373 = vpop.f32.mrb[0].mxu0
        %v374 = vadd.f32 0.0, %v373
        %v375 = vpop.f32.mrb[0].mxu0
        %376 = vdwg.mxu0
        %v377 = vmul.f32 %v315, 0.5
        %v378 = vmul.f32 %v318, 0.5
        %v379 = vmul.f32 %v323, 0.5
        %v380 = vmul.f32 %v326, 0.5
        %v381 = vmul.f32 %v331, 0.5
        %v382 = vmul.f32 %v334, 0.5
        %v383 = vmul.f32 %v339, 0.5
        %v384 = vmul.f32 %v342, 0.5
        %v385 = vmul.f32 %v347, 0.5
        %v386 = vmul.f32 %v350, 0.5
        %v387 = vmul.f32 %v355, 0.5
        %v388 = vmul.f32 %v358, 0.5
        %v389 = vmul.f32 %v363, 0.5
        %v390 = vmul.f32 %v366, 0.5
        %v391 = vmul.f32 %v371, 0.5
        %v392 = vmul.f32 %v374, 0.5
        %v393 = vtanh.pop %v377
        %v394 = vtanh.pop %v378
        %v395 = vtanh.pop %v379
        %v396 = vtanh.pop %v380
        %v397 = vtanh.pop %v381
        %v398 = vtanh.pop %v382
        %v399 = vtanh.pop %v383
        %v400 = vtanh.pop %v384
        %v401 = vtanh.pop %v385
        %v402 = vtanh.pop %v386
        %v403 = vtanh.pop %v387
        %v404 = vtanh.pop %v388
        %v405 = vtanh.pop %v389
        %v406 = vtanh.pop %v390
        %v407 = vtanh.pop %v391
        %v408 = vtanh.pop %v392
        %v409 = vadd.f32 %v393, 1.0
        %v410 = vadd.f32 %v394, 1.0
        %v411 = vadd.f32 %v395, 1.0
        %v412 = vadd.f32 %v396, 1.0
        %v413 = vadd.f32 %v397, 1.0
        %v414 = vadd.f32 %v398, 1.0
        %v415 = vadd.f32 %v399, 1.0
        %v416 = vadd.f32 %v400, 1.0
        %v417 = vadd.f32 %v401, 1.0
        %v418 = vadd.f32 %v402, 1.0
        %v419 = vadd.f32 %v403, 1.0
        %v420 = vadd.f32 %v404, 1.0
        %v421 = vadd.f32 %v405, 1.0
        %v422 = vadd.f32 %v406, 1.0
        %v423 = vadd.f32 %v407, 1.0
        %v424 = vadd.f32 %v408, 1.0
        %v425 = vmul.f32 %v409, 0.5
        %v426 = vmul.f32 %v410, 0.5
        %v427 = vmul.f32 %v411, 0.5
        %v428 = vmul.f32 %v412, 0.5
        %v429 = vmul.f32 %v413, 0.5
        %v430 = vmul.f32 %v414, 0.5
        %v431 = vmul.f32 %v415, 0.5
        %v432 = vmul.f32 %v416, 0.5
        %v433 = vmul.f32 %v417, 0.5
        %v434 = vmul.f32 %v418, 0.5
        %v435 = vmul.f32 %v419, 0.5
        %v436 = vmul.f32 %v420, 0.5
        %v437 = vmul.f32 %v421, 0.5
        %v438 = vmul.f32 %v422, 0.5
        %v439 = vmul.f32 %v423, 0.5
        %v440 = vmul.f32 %v424, 0.5
        %441 = vst [vmem:[%s228] sm:$0xff] %v425
        %442 = vst [vmem:[%s228 + $0x8] sm:$0xff] %v426
        %443 = vst [vmem:[%s228 + $0x10] sm:$0xff] %v427
        %444 = vst [vmem:[%s228 + $0x18] sm:$0xff] %v428
        %445 = vst [vmem:[%s228 + $0x20] sm:$0xff] %v429
        %446 = vst [vmem:[%s228 + $0x28] sm:$0xff] %v430
        %447 = vst [vmem:[%s228 + $0x30] sm:$0xff] %v431
        %448 = vst [vmem:[%s228 + $0x38] sm:$0xff] %v432
        %449 = vst [vmem:[%s228 + $0x40] sm:$0xff] %v433
        %450 = vst [vmem:[%s228 + $0x48] sm:$0xff] %v434
        %451 = vst [vmem:[%s228 + $0x50] sm:$0xff] %v435
        %452 = vst [vmem:[%s228 + $0x58] sm:$0xff] %v436
        %453 = vst [vmem:[%s228 + $0x60] sm:$0xff] %v437
        %454 = vst [vmem:[%s228 + $0x68] sm:$0xff] %v438
        %455 = vst [vmem:[%s228 + $0x70] sm:$0xff] %v439
        %456 = vst [vmem:[%s228 + $0x78] sm:$0xff] %v440
        %s457 = sand.u32 %s107, 1
        %s458 = scalar_lea.sflag [#allocation4], %s457
        %s459 = sand.u32 %s107, 1
        %s460 = smul.addr %s459, 128
        %s461 = scalar_lea.vmem [#allocation7], %s460
        // Predicated region
        $region37: #{tpu_custom_call.1} parent=27 // pred_check
          %p462 = pneg %p117
        $region38: #{tpu_custom_call.1} parent=27 // pred_check_branch
          %464 = sbr.rel (%p462) target = $region40
        $region39: #{tpu_custom_call.1} parent=27 // pred_region
          %s465 = smul.u32 16, %s28
          %s467 = ssub.s32 2048, 2048
          %468 = vsyncadd %s458, %s467
          %s469 = sadd.s32 %s29, %s465
          %s470 = smul.addr %s27, 16
          %s471 = sadd.s32 %s469, %s470
          %s472 = smul.addr %s471, 128
          %s473 = scalar_lea.hbm %s2, %s472
          %s474 = sshll.u32 %s461, 4
          %s475 = int_to_ptr.vmem [resolvable:$true] %s474
          %480 = dma.vmem_to_hbm [thread:$0]  %s475, 2048, %s473, %s458, 128, 128, 8
        $region40: #{tpu_custom_call.1} parent=27 // pred_fallthru
          _
      $region28: #{tpu_custom_call.1} parent=5 // pred_fallthru
        _
      %p481 = scmp.le.s32.totalorder 2, %s17
      // Predicated region
      $region41: #{tpu_custom_call.1} parent=5 // pred_check
        %p482 = pneg %p481
      $region42: #{tpu_custom_call.1} parent=5 // pred_check_branch
        %484 = sbr.rel (%p482) target = $region44
      $region43: #{tpu_custom_call.1} parent=5 // pred_region
        %s485 = ssub.s32 %s17, 2
        // Predicated region
        $region45: #{tpu_custom_call.1} parent=43 // pred_check
          %p486 = pneg %p123
        $region46: #{tpu_custom_call.1} parent=43 // pred_check_branch
          %488 = sbr.rel (%p486) target = $region48
        $region47: #{tpu_custom_call.1} parent=43 // pred_region
          %s489 = sand.u32 %s108, 1
          %s490 = scalar_lea.sflag [#allocation4], %s489
          %s491 = sand.u32 %s108, 1
          %s492 = smul.addr %s491, 128
          %s493 = scalar_lea.vmem [#allocation7], %s492
          %494 = dma.done %s490, 2048
        $region48: #{tpu_custom_call.1} parent=43 // pred_fallthru
          _
      $region44: #{tpu_custom_call.1} parent=5 // pred_fallthru
        _
    $region6: #{tpu_custom_call.1} parent=1 // loop_footer
      %s21 = sadd.s32 1, %s17
    $region7: #{tpu_custom_call.1} parent=1 // loop_footer_branch
      %16 = sbr.rel target = $region3
    $region8: #{tpu_custom_call.1} parent=1 // loop_exit
      _
    %495 = vsyncpa [#allocation3], 1
    %s496 = scalar_lea.sflag [#allocation3], 1
    %497 = vsyncpa %s496, 1
    %498 = vsyncpa [#allocation6], 1
    %s499 = scalar_lea.sflag [#allocation6], 1
    %500 = vsyncpa %s499, 1
    %501 = vsyncpa [#allocation4], 1
    %s502 = scalar_lea.sflag [#allocation4], 1
    %503 = vsyncpa %s502, 1

</llo_original>
